<compile_context>
chip_gen: v7x
topology: tpu7x:2x2x1
jax: 0.10.0
libtpu: 0.0.40
codegen_flags: <defaults>
</compile_context>

<pallas_src>
import functools

import jax
import jax.numpy as jnp
from jax.experimental import pallas as pl
from jax.experimental.pallas import tpu as pltpu


def _repadapter_fused_kernel(x_ref, w_ref, b_ref, o_ref):
    """out = x @ W_eff + b_eff + x  for one (tm, Cp) row tile.

    x_ref : (tm, Cp)  packed input tokens
    w_ref : (Cp, Cp)  fused (scale-premultiplied, lane-packed) weight
    b_ref : (1, Cp)   fused (scale-premultiplied, lane-packed) bias
    o_ref : (tm, Cp)  output tile
    """
    x = x_ref[...]
    y = jnp.dot(x, w_ref[...], preferred_element_type=jnp.float32)
    o_ref[...] = (y + b_ref[...] + x).astype(o_ref.dtype)


def fold_repadapter_params(conv_a_w, conv_a_b, conv_b_w, conv_b_b,
                           *, groups=2, scale=1.0, lanes=128):
    """Fold conv_A, grouped conv_B and scale into one lane-packed weight/bias.

    Call this ONCE per adapter (hoisted out of the forward path).  When C
    divides `lanes`, P = lanes // C tokens are packed per 128-lane row and the
    weight becomes a (P*C, P*C) block-diagonal (kron(I_P, W_eff)) so every
    vld/vst in the kernel is lane-dense.
    """
    H, C = conv_a_w.shape[0], conv_a_w.shape[1]
    G = groups
    Hg, Cg = H // G, C // G

    wa_t = jnp.transpose(conv_a_w[:, :, 0])                        # (C, H)
    ba = conv_a_b.reshape(1, H)                                    # (1, H)
    w_cols, b_cols = [], []
    for g in range(G):
        wb_g = jnp.transpose(conv_b_w[g * Cg:(g + 1) * Cg, :, 0])  # (Hg, Cg)
        w_cols.append(wa_t[:, g * Hg:(g + 1) * Hg] @ wb_g)         # (C, Cg)
        b_cols.append(ba[:, g * Hg:(g + 1) * Hg] @ wb_g)           # (1, Cg)
    w_eff = jnp.concatenate(w_cols, axis=1) * scale                # (C, C)
    b_eff = (jnp.concatenate(b_cols, axis=1)
             + conv_b_b.reshape(1, C)) * scale                     # (1, C)

    P = lanes // C if (C <= lanes and lanes % C == 0) else 1
    if P > 1:
        w_packed = jnp.kron(jnp.eye(P, dtype=w_eff.dtype), w_eff)  # (Cp, Cp)
        b_packed = jnp.tile(b_eff, (1, P))                         # (1, Cp)
    else:
        # NOTE: if C does not divide 128 the stores become lane-sparse
        # (masked) -- still correct, just slower.
        w_packed, b_packed = w_eff, b_eff
    return w_packed, b_packed


def repadapter_forward(x, w_packed, b_packed, *, tm=4096):
    """RepAdapter forward (eval mode) with pre-folded, lane-packed weights.

    x        : (B, N, C)
    w_packed : (Cp, Cp) fused weight (scale pre-multiplied, lane-packed)
    b_packed : (1, Cp)  fused bias
    """
    B, N, C = x.shape
    Cp = w_packed.shape[1]
    P = Cp // C
    M = B * N

    # Pad the token axis only to the packing / sublane granularity
    # (at most 8*P - 1 extra tokens).  The ragged last grid block is handled
    # by Pallas (masked tail copy), so we avoid a full extra HBM pass over x.
    gran = 8 * P
    m_pad = ((M + gran - 1) // gran) * gran
    x_flat = x.reshape(M, C)
    if m_pad != M:
        x_flat = jnp.pad(x_flat, ((0, m_pad - M), (0, 0)))
    rows = m_pad // P
    x_packed = x_flat.reshape(rows, Cp)

    # 2 MiB f32 blocks (tm=4096, Cp=128): ~8 MiB of double-buffered in/out +
    # 64 KiB weight; fits every generation's default scoped-VMEM limit while
    # amortizing the ~0.35 us per-grid-step pipeline overhead.
    tm = max(8, min(tm, rows))          # rows and 4096 are multiples of 8
    grid = (pl.cdiv(rows, tm),)

    itemsize = jnp.dtype(x.dtype).itemsize
    cost = pl.CostEstimate(
        flops=2 * rows * Cp * Cp,
        transcendentals=0,
        bytes_accessed=(2 * rows * Cp + Cp * Cp + Cp) * itemsize,
    )

    out_packed = pl.pallas_call(
        _repadapter_fused_kernel,
        out_shape=jax.ShapeDtypeStruct((rows, Cp), x.dtype),
        grid_spec=pltpu.PrefetchScalarGridSpec(
            num_scalar_prefetch=0,
            grid=grid,
            in_specs=[
                pl.BlockSpec((tm, Cp), lambda i: (i, 0)),
                pl.BlockSpec((Cp, Cp), lambda i: (0, 0)),
                pl.BlockSpec((1, Cp), lambda i: (0, 0)),
            ],
            out_specs=pl.BlockSpec((tm, Cp), lambda i: (i, 0)),
        ),
        compiler_params=pltpu.CompilerParams(
            dimension_semantics=("parallel",)),
        cost_estimate=cost,
    )(x_packed, w_packed, b_packed)

    out_flat = out_packed.reshape(m_pad, C)
    if m_pad != M:
        out_flat = out_flat[:M]
    return out_flat.reshape(B, N, C)


def _reference_forward(x, conv_a_w, conv_a_b, conv_b_w, conv_b_b,
                       *, groups, scale):
    """Pure-JAX reference mirroring the PyTorch forward (eval mode)."""
    B, N, C = x.shape
    H = conv_a_w.shape[0]
    G = groups
    Hg, Cg = H // G, C // G
    h = jnp.einsum("bnc,hc->bnh", x, conv_a_w[:, :, 0]) + conv_a_b
    outs = []
    for g in range(G):
        hg = h[..., g * Hg:(g + 1) * Hg]
        wg = conv_b_w[g * Cg:(g + 1) * Cg, :, 0]             # (Cg, Hg)
        outs.append(jnp.einsum("bnh,ch->bnc", hg, wg)
                    + conv_b_b[g * Cg:(g + 1) * Cg])
    o = jnp.concatenate(outs, axis=-1)
    return o * scale + x


if __name__ == "__main__":
    # Small shapes consistent with the module: in_features=32, hidden_dim=8,
    # groups=2; input x is (batch=2, seq=8, channels=32).
    B, N, C, H, G = 2, 8, 32, 8, 2
    scale = 0.5

    key = jax.random.PRNGKey(0)
    kx, kwa, kba, kwb, kbb = jax.random.split(key, 5)

    # Use nonzero / random parameters everywhere so the grouped-conv, bias and
    # scale paths are actually exercised (module-default zero init for conv_B
    # would make the output trivially equal x).
    fan_in, fan_out = C * 1, H * 1
    bound = (6.0 / (fan_in + fan_out)) ** 0.5
    conv_a_w = jax.random.uniform(kwa, (H, C, 1), jnp.float32, -bound, bound)
    conv_a_b = 0.1 * jax.random.normal(kba, (H,), jnp.float32)
    conv_b_w = 0.1 * jax.random.normal(kwb, (C, H // G, 1), jnp.float32)
    conv_b_b = 0.1 * jax.random.normal(kbb, (C,), jnp.float32)

    x = jax.random.normal(kx, (B, N, C), jnp.float32)

    # Fold + lane-pack the adapter weights ONCE (hoisted out of the forward).
    w_packed, b_packed = fold_repadapter_params(
        conv_a_w, conv_a_b, conv_b_w, conv_b_b, groups=G, scale=scale)
    w_packed = jax.block_until_ready(w_packed)
    b_packed = jax.block_until_ready(b_packed)

    fwd = jax.jit(functools.partial(
        repadapter_forward, w_packed=w_packed, b_packed=b_packed))
    out = jax.block_until_ready(fwd(x))

    ref = _reference_forward(x, conv_a_w, conv_a_b, conv_b_w, conv_b_b,
                             groups=G, scale=scale)
    assert out.shape == (B, N, C)
    assert jnp.allclose(out, ref, atol=1e-5, rtol=1e-5), (
        float(jnp.max(jnp.abs(out - ref))))

    print("KERNEL_OK")
</pallas_src>

<mosaic_0001>
module attributes {stable_mosaic.version = 11 : i64} {
  func.func @_repadapter_fused_kernel(%arg0: i32, %arg1: memref<8x128xf32, #tpu.memory_space<vmem>>, %arg2: memref<128x128xf32, #tpu.memory_space<vmem>>, %arg3: memref<1x128xf32, #tpu.memory_space<vmem>>, %arg4: memref<8x128xf32, #tpu.memory_space<vmem>>) attributes {dimension_semantics = [#tpu.dimension_semantics<parallel>], iteration_bounds = array<i64: 1>, scalar_prefetch = 0 : i64, scratch_operands = 0 : i64, tpu.core_type = #tpu.core_type<tc>, window_params = [{transform_indices = @transform_0, window_bounds = array<i64: 8, 128>}, {pipeline_mode = #tpu.pipeline_mode<synchronous>, transform_indices = @transform_1, window_bounds = array<i64: 128, 128>}, {pipeline_mode = #tpu.pipeline_mode<synchronous>, transform_indices = @transform_2, window_bounds = array<i64: 1, 128>}, {transform_indices = @transform_3, window_bounds = array<i64: 8, 128>}]} {
    %c0 = arith.constant 0 : index
    %c0_0 = arith.constant 0 : index
    %0 = vector.load %arg1[%c0, %c0_0] : memref<8x128xf32, #tpu.memory_space<vmem>>, vector<8x128xf32>
    %c0_1 = arith.constant 0 : index
    %c0_2 = arith.constant 0 : index
    %1 = vector.load %arg2[%c0_1, %c0_2] : memref<128x128xf32, #tpu.memory_space<vmem>>, vector<128x128xf32>
    %cst = arith.constant dense<0.000000e+00> : vector<8x128xf32>
    %2 = tpu.matmul %0, %1, %cst {dimension_numbers = #tpu.dot_dimension_numbers<[1], [0], [0], [1], [0, 0, 1, 1], [], []>} : vector<8x128xf32>, vector<128x128xf32>, vector<8x128xf32> -> vector<8x128xf32>
    %c0_3 = arith.constant 0 : index
    %c0_4 = arith.constant 0 : index
    %3 = vector.load %arg3[%c0_3, %c0_4] : memref<1x128xf32, #tpu.memory_space<vmem>>, vector<1x128xf32>
    %4 = vector.broadcast %3 : vector<1x128xf32> to vector<8x128xf32>
    %5 = arith.addf %2, %4 : vector<8x128xf32>
    %6 = arith.addf %5, %0 : vector<8x128xf32>
    %c0_5 = arith.constant 0 : index
    %c0_6 = arith.constant 0 : index
    %7 = vector.load %arg4[%c0_5, %c0_6] : memref<8x128xf32, #tpu.memory_space<vmem>>, vector<8x128xf32>
    tpu.vector_store %arg4[%c0_5, %c0_6], %6 {strides = array<i32>} : memref<8x128xf32, #tpu.memory_space<vmem>>, vector<8x128xf32>,
    return
  }
  func.func @transform_0(%arg0: i32) -> (i32, i32) {
    %c0_i32 = arith.constant 0 : i32
    %c0_i32_0 = arith.constant 0 : i32
    return %arg0, %c0_i32 : i32, i32
  }
  func.func @transform_1(%arg0: i32) -> (i32, i32) {
    %c0_i32 = arith.constant 0 : i32
    %c0_i32_0 = arith.constant 0 : i32
    %c0_i32_1 = arith.constant 0 : i32
    return %c0_i32, %c0_i32_0 : i32, i32
  }
  func.func @transform_2(%arg0: i32) -> (i32, i32) {
    %c0_i32 = arith.constant 0 : i32
    %c0_i32_0 = arith.constant 0 : i32
    %c0_i32_1 = arith.constant 0 : i32
    return %c0_i32, %c0_i32_0 : i32, i32
  }
  func.func @transform_3(%arg0: i32) -> (i32, i32) {
    %c0_i32 = arith.constant 0 : i32
    %c0_i32_0 = arith.constant 0 : i32
    return %arg0, %c0_i32 : i32, i32
  }
}

</mosaic_0001>

<llo_original>
// kernel: repadapter_forward.1
$region0: #{repadapter_forward.1}
  #allocation0 [shape = 'u32[]', space=smem, size = 0x4, offset = 0x4, fixed_abs, tag = 'smem constant byte address 0x4 - core index']
  #allocation1 [shape = 'u32[144,128]{1,0:T(1,128)}', space=vmem, size = 0x12000, scoped, tag = 'internal scratch']
  %s0 = inlined_call_operand.vmem [shape: f32[8,128], index: 0, kind: input, shape index: {}]
  %s1 = inlined_call_operand.hbm [shape: f32[128,128], index: 1, kind: input, shape index: {}]
  %s2 = inlined_call_operand.vmem [shape: f32[1,128], index: 2, kind: input, shape index: {}]
  %s3 = inlined_call_operand.vmem [shape: f32[8,128], index: 3, kind: output, shape index: {}]
  %s4 = sld [smem:[#allocation0]]
  $region26: #{repadapter_forward.1} parent=0
    _
  %s6 = ssub.s32 1, %s4
  %s7 = scalar_select 0, %s6, %s4
  $region1: #{repadapter_forward.1} parent=0
    #allocation2 [shape = 'u8[65536]{0}', space=vmem, size = 0x10000, scoped, tag = 'input window, operand 1, single buffered']
    #allocation3 [shape = 's32[1]{0}', space=sflag, size = 0x4, scoped, tag = 'scoped memory for repadapter_forward.1']
    %8 = vsyncpa [#allocation3], 0
    // Predicated region
    $region2: #{repadapter_forward.1} parent=1 // pred_check
      _
    $region3: #{repadapter_forward.1} parent=1 // pred_check_branch
      %10 = sbr.rel (0) target = $region5
    $region4: #{repadapter_forward.1} parent=1 // pred_region
      _
    $region5: #{repadapter_forward.1} parent=1 // pred_fallthru
      _
    // Predicated region
    $region6: #{repadapter_forward.1} parent=1 // pred_check
      _
    $region7: #{repadapter_forward.1} parent=1 // pred_check_branch
      %12 = sbr.rel (0) target = $region9
    $region8: #{repadapter_forward.1} parent=1 // pred_region
      %s14 = ssub.s32 2048, 2048
      %15 = vsyncadd [#allocation3], %s14
      %s16 = sshll.u32 [#allocation2], 4
      %s17 = int_to_ptr.vmem [resolvable:$true] %s16
      %22 = dma.hbm_to_vmem [thread:$0]  %s1, 2048, %s17, [#allocation3], 128, 128, 8
    $region9: #{repadapter_forward.1} parent=1 // pred_fallthru
      _
    // Predicated region
    $region10: #{repadapter_forward.1} parent=1 // pred_check
      _
    $region11: #{repadapter_forward.1} parent=1 // pred_check_branch
      %24 = sbr.rel (0) target = $region13
    $region12: #{repadapter_forward.1} parent=1 // pred_region
      _
    $region13: #{repadapter_forward.1} parent=1 // pred_fallthru
      _
    // Predicated region
    $region14: #{repadapter_forward.1} parent=1 // pred_check
      _
    $region15: #{repadapter_forward.1} parent=1 // pred_check_branch
      %26 = sbr.rel (0) target = $region17
    $region16: #{repadapter_forward.1} parent=1 // pred_region
      %27 = dma.done [#allocation3], 2048
    $region17: #{repadapter_forward.1} parent=1 // pred_fallthru
      _
    %v28 = vld [vmem:[%s0] sm:$0xff]
    %v29 = vld [vmem:[#allocation2] sm:$0xff]
    %v30 = vld [vmem:[#allocation2 + $0x8] sm:$0xff]
    %v31 = vld [vmem:[#allocation2 + $0x10] sm:$0xff]
    %v32 = vld [vmem:[#allocation2 + $0x18] sm:$0xff]
    %v33 = vld [vmem:[#allocation2 + $0x20] sm:$0xff]
    %v34 = vld [vmem:[#allocation2 + $0x28] sm:$0xff]
    %v35 = vld [vmem:[#allocation2 + $0x30] sm:$0xff]
    %v36 = vld [vmem:[#allocation2 + $0x38] sm:$0xff]
    %v37 = vld [vmem:[#allocation2 + $0x40] sm:$0xff]
    %v38 = vld [vmem:[#allocation2 + $0x48] sm:$0xff]
    %v39 = vld [vmem:[#allocation2 + $0x50] sm:$0xff]
    %v40 = vld [vmem:[#allocation2 + $0x58] sm:$0xff]
    %v41 = vld [vmem:[#allocation2 + $0x60] sm:$0xff]
    %v42 = vld [vmem:[#allocation2 + $0x68] sm:$0xff]
    %v43 = vld [vmem:[#allocation2 + $0x70] sm:$0xff]
    %v44 = vld [vmem:[#allocation2 + $0x78] sm:$0xff]
    %v45 = vld [vmem:[%s2] sm:$0x1]
    %v47 = vlaneseq
    %v48 = vshrl.u32 %v47, 7
    %v49 = vsub.s32 0, %v48
    %v50 = vrot.slane %v45, %v49
    %52 = vmatprep.subr.mxu0 0.0
    %53 = vmatpush1.msra.mxu0 %v29
    %54 = vmatprep.subr.mxu0 0.0
    %55 = vmatpush1.msra.mxu0 %v30
    %56 = vmatprep.subr.mxu0 0.0
    %57 = vmatpush1.msra.mxu0 %v31
    %58 = vmatprep.subr.mxu0 0.0
    %59 = vmatpush1.msra.mxu0 %v32
    %60 = vmatprep.subr.mxu0 0.0
    %61 = vmatpush1.msra.mxu0 %v33
    %62 = vmatprep.subr.mxu0 0.0
    %63 = vmatpush1.msra.mxu0 %v34
    %64 = vmatprep.subr.mxu0 0.0
    %65 = vmatpush1.msra.mxu0 %v35
    %66 = vmatprep.subr.mxu0 0.0
    %67 = vmatpush1.msra.mxu0 %v36
    %68 = vmatprep.subr.mxu0 0.0
    %69 = vmatpush1.msra.mxu0 %v37
    %70 = vmatprep.subr.mxu0 0.0
    %71 = vmatpush1.msra.mxu0 %v38
    %72 = vmatprep.subr.mxu0 0.0
    %73 = vmatpush1.msra.mxu0 %v39
    %74 = vmatprep.subr.mxu0 0.0
    %75 = vmatpush1.msra.mxu0 %v40
    %76 = vmatprep.subr.mxu0 0.0
    %77 = vmatpush1.msra.mxu0 %v41
    %78 = vmatprep.subr.mxu0 0.0
    %79 = vmatpush1.msra.mxu0 %v42
    %80 = vmatprep.subr.mxu0 0.0
    %81 = vmatpush1.msra.mxu0 %v43
    %82 = vmatprep.subr.mxu0 0.0
    %83 = vmatpush1.msra.mxu0 %v44
    %84 = vmatprep.subr.mxu0 0.0
    %85 = vmatpush1.msra.mxu0 0.0
    %86 = vmatprep.subr.mxu0 0.0
    %87 = vmatpush1.msra.mxu0 0.0
    %88 = vmatprep.subr.mxu0 0.0
    %89 = vmatpush1.msra.mxu0 0.0
    %90 = vmatprep.subr.mxu0 0.0
    %91 = vmatpush1.msra.mxu0 0.0
    %92 = vmatprep.subr.mxu0 0.0
    %93 = vmatpush1.msra.mxu0 0.0
    %94 = vmatprep.subr.mxu0 0.0
    %95 = vmatpush1.msra.mxu0 0.0
    %96 = vmatprep.subr.mxu0 0.0
    %97 = vmatpush1.msra.mxu0 0.0
    %98 = vmatprep.subr.mxu0 0.0
    %99 = vmatpush1.msra.mxu0 0.0
    %100 = vmatprep.subr.mxu0 0.0
    %101 = vmatpush1.msra.mxu0 0.0
    %102 = vmatprep.subr.mxu0 0.0
    %103 = vmatpush1.msra.mxu0 0.0
    %104 = vmatprep.subr.mxu0 0.0
    %105 = vmatpush1.msra.mxu0 0.0
    %106 = vmatprep.subr.mxu0 0.0
    %107 = vmatpush1.msra.mxu0 0.0
    %108 = vmatprep.subr.mxu0 0.0
    %109 = vmatpush1.msra.mxu0 0.0
    %110 = vmatprep.subr.mxu0 0.0
    %111 = vmatpush1.msra.mxu0 0.0
    %112 = vmatprep.subr.mxu0 0.0
    %113 = vmatpush1.msra.mxu0 0.0
    %114 = vmatprep.subr.mxu0 0.0
    %115 = vmatpush1.msra.mxu0 0.0
    %116 = vmatprep.mubr.f32.mxu0 0.0
    %117 = vmatmul.mubr.f32.gmra.mrb[0].mxu0 %v28
    %v118 = vpop.f32.mrb[0].mxu0
    %v119 = vadd.f32 %v50, %v118
    %v120 = vpop.f32.mrb[0].mxu0
    %121 = vdwg.mxu0
    %v122 = vadd.f32 %v119, %v28
    %123 = vst [vmem:[%s3] sm:$0xff] %v122
    // Predicated region
    $region18: #{repadapter_forward.1} parent=1 // pred_check
      _
    $region19: #{repadapter_forward.1} parent=1 // pred_check_branch
      %125 = sbr.rel (0) target = $region21
    $region20: #{repadapter_forward.1} parent=1 // pred_region
      _
    $region21: #{repadapter_forward.1} parent=1 // pred_fallthru
      _
    // Predicated region
    $region22: #{repadapter_forward.1} parent=1 // pred_check
      _
    $region23: #{repadapter_forward.1} parent=1 // pred_check_branch
      %127 = sbr.rel (0) target = $region25
    $region24: #{repadapter_forward.1} parent=1 // pred_region
      _
    $region25: #{repadapter_forward.1} parent=1 // pred_fallthru
      _
    %128 = vsyncpa [#allocation3], 1

</llo_original>
